<compile_context>
chip_gen: v7x
topology: tpu7x:2x2x1
jax: 0.10.0
libtpu: 0.0.40
codegen_flags: <defaults>
</compile_context>

<pallas_src>
import jax
import jax.numpy as jnp
import numpy as np
from jax.experimental import pallas as pl
from jax.experimental.pallas import tpu as pltpu

_LANE = 128


def _dice_partial_kernel(y_ref, m_ref, out_ref):
    # y_ref:   (BT, 3, TS, 128)  logits
    # m_ref:   (BT, 4, TS, 128)  [ignore, tgt0, tgt1, tgt2]
    # out_ref: (1, 1, 9, 128)    per-tile partial sums, lane axis preserved
    f32 = jnp.float32

    y0 = y_ref[:, 0].astype(f32)
    y1 = y_ref[:, 1].astype(f32)
    y2 = y_ref[:, 2].astype(f32)

    valid = 1.0 - m_ref[:, 0].astype(f32)
    t0 = m_ref[:, 1].astype(f32)
    t1 = m_ref[:, 2].astype(f32)
    t2 = m_ref[:, 3].astype(f32)

    # argmax over the 3 classes as element-wise one-hot (first-max tie break,
    # matching torch/jnp argmax) — pure VPU, no cross-sublane movement.
    mx = jnp.maximum(jnp.maximum(y0, y1), y2)
    n0 = y0 != mx
    p0 = (y0 == mx).astype(f32)
    p1 = jnp.logical_and(y1 == mx, n0).astype(f32)
    p2 = jnp.logical_and(jnp.logical_and(y2 == mx, n0), y1 != mx).astype(f32)

    pv0 = p0 * valid
    pv1 = p1 * valid
    pv2 = p2 * valid
    tv0 = t0 * valid
    tv1 = t1 * valid
    tv2 = t2 * valid

    def lanesum(x):  # (BT, TS, 128) -> (1, 128): reduce batch + sublanes, keep lanes
        s = jnp.sum(x, axis=0)
        return jnp.sum(s, axis=0, keepdims=True)

    rows = [pv0 * t0, pv1 * t1, pv2 * t2,   # tp per class
            pv0, pv1, pv2,                  # sum(pred * valid) per class
            tv0, tv1, tv2]                  # sum(tgt * valid) per class
    for k, r in enumerate(rows):
        out_ref[0, 0, k:k + 1, :] = lanesum(r)


def dice_score_pallas(y_pr, mask, smooth=1.0, max_rows=512):
    """y_pr: (N, 3, H, W) logits;  mask: (N, 4, H, W) = [ignore, tgt(3 classes)]."""
    N, C, H, W = y_pr.shape
    assert C == 3, "kernel implements the 3-class (argmax) branch of DiceScore"
    Cm = mask.shape[1]
    assert Cm == 4
    HW = H * W

    y = y_pr.reshape(N, C, HW)
    m = mask.reshape(N, Cm, HW)

    # --- tiling: spatial pixels -> (S, 128) rows, tiled over batch + rows ---
    S = -(-HW // _LANE)                    # rows of 128 lanes
    if S <= max_rows:
        TS = S
        S_pad = S
    else:
        TS = max_rows
        S_pad = -(-S // TS) * TS
    HW_pad = S_pad * _LANE

    BT = max(1, min(N, max_rows // max(TS, 1)))   # fold batch when images are small
    N_pad = -(-N // BT) * BT

    # Padded pixels/samples: mask padded with 1 => ignore=1 => valid=0, so they
    # contribute nothing to tp / pred*valid / tgt*valid. Logits padded with 0.
    pad_hw = HW_pad - HW
    if pad_hw:
        y = jnp.pad(y, ((0, 0), (0, 0), (0, pad_hw)))
        m = jnp.pad(m, ((0, 0), (0, 0), (0, pad_hw)), constant_values=1)
    pad_n = N_pad - N
    if pad_n:
        y = jnp.pad(y, ((0, pad_n), (0, 0), (0, 0)))
        m = jnp.pad(m, ((0, pad_n), (0, 0), (0, 0)), constant_values=1)

    y4 = y.reshape(N_pad, C, S_pad, _LANE)
    m4 = m.reshape(N_pad, Cm, S_pad, _LANE)

    NB = N_pad // BT
    NS = S_pad // TS

    partials = pl.pallas_call(
        _dice_partial_kernel,
        out_shape=jax.ShapeDtypeStruct((NB, NS, 9, _LANE), jnp.float32),
        grid=(NB, NS),
        in_specs=[
            pl.BlockSpec((BT, C, TS, _LANE), lambda b, s: (b, 0, s, 0)),
            pl.BlockSpec((BT, Cm, TS, _LANE), lambda b, s: (b, 0, s, 0)),
        ],
        out_specs=pl.BlockSpec((1, 1, 9, _LANE), lambda b, s: (b, s, 0, 0)),
        compiler_params=pltpu.CompilerParams(
            dimension_semantics=("parallel", "parallel")),
    )(y4, m4)

    # tiny JAX epilogue: sum per-tile / per-lane partials, form dice ratios
    sums = jnp.sum(partials, axis=(0, 1, 3))   # (9,)
    tp = sums[0:3]
    ps = sums[3:6]
    ts = sums[6:9]
    fp = ps - tp
    fn = ts - tp
    dice = (2.0 * tp + smooth) / (2.0 * tp + fp + fn + smooth)
    return dice.mean()


def dice_score_ref(y_pr, mask, smooth=1.0):
    """Pure-JAX reference mirroring the PyTorch Dice.forward semantics."""
    ignore = mask[:, 0:1].astype(jnp.float32)
    tgt = mask[:, 1:4].astype(jnp.float32)
    idx = jnp.argmax(y_pr, axis=1, keepdims=True)
    onehot = jnp.concatenate(
        [(idx == k).astype(jnp.float32) for k in range(3)], axis=1)
    valid = 1.0 - ignore
    tp = jnp.sum(onehot * tgt * valid, axis=(0, 2, 3))
    fp = jnp.sum(onehot * valid, axis=(0, 2, 3)) - tp
    fn = jnp.sum(tgt * valid, axis=(0, 2, 3)) - tp
    return jnp.mean((2.0 * tp + smooth) / (2.0 * tp + fp + fn + smooth))


def _make_inputs(key, N, H, W):
    k1, k2, k3 = jax.random.split(key, 3)
    y_pr = jax.random.normal(k1, (N, 3, H, W), dtype=jnp.float32)
    labels = jax.random.randint(k2, (N, H, W), 0, 3)
    tgt = jax.nn.one_hot(labels, 3, dtype=jnp.float32)          # (N, H, W, 3)
    tgt = jnp.transpose(tgt, (0, 3, 1, 2))                       # (N, 3, H, W)
    ignore = (jax.random.uniform(k3, (N, 1, H, W)) < 0.1).astype(jnp.float32)
    mask = jnp.concatenate([ignore, tgt], axis=1)                # (N, 4, H, W)
    return y_pr, mask


if __name__ == "__main__":
    key = jax.random.PRNGKey(0)
    ka, kb = jax.random.split(key)

    # Case 1: small, lane-aligned (N=2, 16x16 -> HW=256)
    y_pr, mask = _make_inputs(ka, 2, 16, 16)
    score = jax.block_until_ready(dice_score_pallas(y_pr, mask))
    ref = jax.block_until_ready(dice_score_ref(y_pr, mask))
    assert np.allclose(np.asarray(score), np.asarray(ref), rtol=1e-5, atol=1e-5), (
        float(score), float(ref))

    # Case 2: non-aligned spatial size exercising the pad path (N=3, 20x20)
    y_pr2, mask2 = _make_inputs(kb, 3, 20, 20)
    score2 = jax.block_until_ready(dice_score_pallas(y_pr2, mask2))
    ref2 = jax.block_until_ready(dice_score_ref(y_pr2, mask2))
    assert np.allclose(np.asarray(score2), np.asarray(ref2), rtol=1e-5, atol=1e-5), (
        float(score2), float(ref2))

    print("KERNEL_OK")
</pallas_src>

<mosaic_0001>
module attributes {stable_mosaic.version = 11 : i64} {
  func.func @_dice_partial_kernel(%arg0: i32, %arg1: i32, %arg2: memref<2x3x2x128xf32, #tpu.memory_space<vmem>>, %arg3: memref<2x4x2x128xf32, #tpu.memory_space<vmem>>, %arg4: memref<1x1x9x128xf32, #tpu.memory_space<vmem>>) attributes {dimension_semantics = [#tpu.dimension_semantics<parallel>, #tpu.dimension_semantics<parallel>], iteration_bounds = array<i64: 1, 1>, scalar_prefetch = 0 : i64, scratch_operands = 0 : i64, tpu.core_type = #tpu.core_type<tc>, window_params = [{transform_indices = @transform_0, window_bounds = array<i64: 2, 3, 2, 128>}, {transform_indices = @transform_1, window_bounds = array<i64: 2, 4, 2, 128>}, {transform_indices = @transform_2, window_bounds = array<i64: 1, 1, 9, 128>}]} {
    %c0 = arith.constant 0 : index
    %c0_0 = arith.constant 0 : index
    %c0_1 = arith.constant 0 : index
    %c0_2 = arith.constant 0 : index
    %0 = vector.load %arg2[%c0, %c0_0, %c0_1, %c0_2] : memref<2x3x2x128xf32, #tpu.memory_space<vmem>>, vector<2x1x2x128xf32>
    %1 = vector.shape_cast %0 : vector<2x1x2x128xf32> to vector<2x2x128xf32>
    %c0_3 = arith.constant 0 : index
    %c1 = arith.constant 1 : index
    %c0_4 = arith.constant 0 : index
    %c0_5 = arith.constant 0 : index
    %2 = vector.load %arg2[%c0_3, %c1, %c0_4, %c0_5] : memref<2x3x2x128xf32, #tpu.memory_space<vmem>>, vector<2x1x2x128xf32>
    %3 = vector.shape_cast %2 : vector<2x1x2x128xf32> to vector<2x2x128xf32>
    %c0_6 = arith.constant 0 : index
    %c2 = arith.constant 2 : index
    %c0_7 = arith.constant 0 : index
    %c0_8 = arith.constant 0 : index
    %4 = vector.load %arg2[%c0_6, %c2, %c0_7, %c0_8] : memref<2x3x2x128xf32, #tpu.memory_space<vmem>>, vector<2x1x2x128xf32>
    %5 = vector.shape_cast %4 : vector<2x1x2x128xf32> to vector<2x2x128xf32>
    %c0_9 = arith.constant 0 : index
    %c0_10 = arith.constant 0 : index
    %c0_11 = arith.constant 0 : index
    %c0_12 = arith.constant 0 : index
    %6 = vector.load %arg3[%c0_9, %c0_10, %c0_11, %c0_12] : memref<2x4x2x128xf32, #tpu.memory_space<vmem>>, vector<2x1x2x128xf32>
    %7 = vector.shape_cast %6 : vector<2x1x2x128xf32> to vector<2x2x128xf32>
    %cst = arith.constant 1.000000e+00 : f32
    %8 = vector.broadcast %cst : f32 to vector<2x2x128xf32>
    %9 = arith.subf %8, %7 : vector<2x2x128xf32>
    %c0_13 = arith.constant 0 : index
    %c1_14 = arith.constant 1 : index
    %c0_15 = arith.constant 0 : index
    %c0_16 = arith.constant 0 : index
    %10 = vector.load %arg3[%c0_13, %c1_14, %c0_15, %c0_16] : memref<2x4x2x128xf32, #tpu.memory_space<vmem>>, vector<2x1x2x128xf32>
    %11 = vector.shape_cast %10 : vector<2x1x2x128xf32> to vector<2x2x128xf32>
    %c0_17 = arith.constant 0 : index
    %c2_18 = arith.constant 2 : index
    %c0_19 = arith.constant 0 : index
    %c0_20 = arith.constant 0 : index
    %12 = vector.load %arg3[%c0_17, %c2_18, %c0_19, %c0_20] : memref<2x4x2x128xf32, #tpu.memory_space<vmem>>, vector<2x1x2x128xf32>
    %13 = vector.shape_cast %12 : vector<2x1x2x128xf32> to vector<2x2x128xf32>
    %c0_21 = arith.constant 0 : index
    %c3 = arith.constant 3 : index
    %c0_22 = arith.constant 0 : index
    %c0_23 = arith.constant 0 : index
    %14 = vector.load %arg3[%c0_21, %c3, %c0_22, %c0_23] : memref<2x4x2x128xf32, #tpu.memory_space<vmem>>, vector<2x1x2x128xf32>
    %15 = vector.shape_cast %14 : vector<2x1x2x128xf32> to vector<2x2x128xf32>
    %16 = arith.maximumf %1, %3 : vector<2x2x128xf32>
    %17 = arith.maximumf %16, %5 : vector<2x2x128xf32>
    %18 = arith.cmpf one, %1, %17 : vector<2x2x128xf32>
    %19 = arith.cmpf oeq, %1, %17 : vector<2x2x128xf32>
    %20 = arith.extui %19 : vector<2x2x128xi1> to vector<2x2x128xi32>
    %21 = arith.sitofp %20 : vector<2x2x128xi32> to vector<2x2x128xf32>
    %22 = arith.cmpf oeq, %3, %17 : vector<2x2x128xf32>
    %23 = arith.andi %22, %18 : vector<2x2x128xi1>
    %24 = arith.extui %23 : vector<2x2x128xi1> to vector<2x2x128xi32>
    %25 = arith.sitofp %24 : vector<2x2x128xi32> to vector<2x2x128xf32>
    %26 = arith.cmpf oeq, %5, %17 : vector<2x2x128xf32>
    %27 = arith.andi %26, %18 : vector<2x2x128xi1>
    %28 = arith.cmpf one, %3, %17 : vector<2x2x128xf32>
    %29 = arith.andi %27, %28 : vector<2x2x128xi1>
    %30 = arith.extui %29 : vector<2x2x128xi1> to vector<2x2x128xi32>
    %31 = arith.sitofp %30 : vector<2x2x128xi32> to vector<2x2x128xf32>
    %32 = arith.mulf %21, %9 : vector<2x2x128xf32>
    %33 = arith.mulf %25, %9 : vector<2x2x128xf32>
    %34 = arith.mulf %31, %9 : vector<2x2x128xf32>
    %35 = arith.mulf %11, %9 : vector<2x2x128xf32>
    %36 = arith.mulf %13, %9 : vector<2x2x128xf32>
    %37 = arith.mulf %15, %9 : vector<2x2x128xf32>
    %38 = arith.mulf %32, %11 : vector<2x2x128xf32>
    %39 = arith.mulf %33, %13 : vector<2x2x128xf32>
    %40 = arith.mulf %34, %15 : vector<2x2x128xf32>
    %cst_24 = arith.constant dense<0.000000e+00> : vector<2x128xf32>
    %41 = vector.multi_reduction <add>, %38, %cst_24 [0] : vector<2x2x128xf32> to vector<2x128xf32>
    %cst_25 = arith.constant dense<0.000000e+00> : vector<128xf32>
    %42 = vector.multi_reduction <add>, %41, %cst_25 [0] : vector<2x128xf32> to vector<128xf32>
    %43 = vector.shape_cast %42 : vector<128xf32> to vector<1x128xf32>
    %c0_26 = arith.constant 0 : index
    %c0_27 = arith.constant 0 : index
    %c0_28 = arith.constant 0 : index
    %c0_29 = arith.constant 0 : index
    %44 = vector.load %arg4[%c0_26, %c0_27, %c0_28, %c0_29] : memref<1x1x9x128xf32, #tpu.memory_space<vmem>>, vector<1x1x1x128xf32>
    %45 = vector.shape_cast %44 : vector<1x1x1x128xf32> to vector<1x128xf32>
    %46 = vector.shape_cast %43 : vector<1x128xf32> to vector<1x1x1x128xf32>
    tpu.vector_store %arg4[%c0_26, %c0_27, %c0_28, %c0_29], %46 {strides = array<i32>} : memref<1x1x9x128xf32, #tpu.memory_space<vmem>>, vector<1x1x1x128xf32>,
    %cst_30 = arith.constant dense<0.000000e+00> : vector<2x128xf32>
    %47 = vector.multi_reduction <add>, %39, %cst_30 [0] : vector<2x2x128xf32> to vector<2x128xf32>
    %cst_31 = arith.constant dense<0.000000e+00> : vector<128xf32>
    %48 = vector.multi_reduction <add>, %47, %cst_31 [0] : vector<2x128xf32> to vector<128xf32>
    %49 = vector.shape_cast %48 : vector<128xf32> to vector<1x128xf32>
    %c0_32 = arith.constant 0 : index
    %c0_33 = arith.constant 0 : index
    %c1_34 = arith.constant 1 : index
    %c0_35 = arith.constant 0 : index
    %50 = vector.load %arg4[%c0_32, %c0_33, %c1_34, %c0_35] : memref<1x1x9x128xf32, #tpu.memory_space<vmem>>, vector<1x1x1x128xf32>
    %51 = vector.shape_cast %50 : vector<1x1x1x128xf32> to vector<1x128xf32>
    %52 = vector.shape_cast %49 : vector<1x128xf32> to vector<1x1x1x128xf32>
    tpu.vector_store %arg4[%c0_32, %c0_33, %c1_34, %c0_35], %52 {strides = array<i32>} : memref<1x1x9x128xf32, #tpu.memory_space<vmem>>, vector<1x1x1x128xf32>,
    %cst_36 = arith.constant dense<0.000000e+00> : vector<2x128xf32>
    %53 = vector.multi_reduction <add>, %40, %cst_36 [0] : vector<2x2x128xf32> to vector<2x128xf32>
    %cst_37 = arith.constant dense<0.000000e+00> : vector<128xf32>
    %54 = vector.multi_reduction <add>, %53, %cst_37 [0] : vector<2x128xf32> to vector<128xf32>
    %55 = vector.shape_cast %54 : vector<128xf32> to vector<1x128xf32>
    %c0_38 = arith.constant 0 : index
    %c0_39 = arith.constant 0 : index
    %c2_40 = arith.constant 2 : index
    %c0_41 = arith.constant 0 : index
    %56 = vector.load %arg4[%c0_38, %c0_39, %c2_40, %c0_41] : memref<1x1x9x128xf32, #tpu.memory_space<vmem>>, vector<1x1x1x128xf32>
    %57 = vector.shape_cast %56 : vector<1x1x1x128xf32> to vector<1x128xf32>
    %58 = vector.shape_cast %55 : vector<1x128xf32> to vector<1x1x1x128xf32>
    tpu.vector_store %arg4[%c0_38, %c0_39, %c2_40, %c0_41], %58 {strides = array<i32>} : memref<1x1x9x128xf32, #tpu.memory_space<vmem>>, vector<1x1x1x128xf32>,
    %cst_42 = arith.constant dense<0.000000e+00> : vector<2x128xf32>
    %59 = vector.multi_reduction <add>, %32, %cst_42 [0] : vector<2x2x128xf32> to vector<2x128xf32>
    %cst_43 = arith.constant dense<0.000000e+00> : vector<128xf32>
    %60 = vector.multi_reduction <add>, %59, %cst_43 [0] : vector<2x128xf32> to vector<128xf32>
    %61 = vector.shape_cast %60 : vector<128xf32> to vector<1x128xf32>
    %c0_44 = arith.constant 0 : index
    %c0_45 = arith.constant 0 : index
    %c3_46 = arith.constant 3 : index
    %c0_47 = arith.constant 0 : index
    %62 = vector.load %arg4[%c0_44, %c0_45, %c3_46, %c0_47] : memref<1x1x9x128xf32, #tpu.memory_space<vmem>>, vector<1x1x1x128xf32>
    %63 = vector.shape_cast %62 : vector<1x1x1x128xf32> to vector<1x128xf32>
    %64 = vector.shape_cast %61 : vector<1x128xf32> to vector<1x1x1x128xf32>
    tpu.vector_store %arg4[%c0_44, %c0_45, %c3_46, %c0_47], %64 {strides = array<i32>} : memref<1x1x9x128xf32, #tpu.memory_space<vmem>>, vector<1x1x1x128xf32>,
    %cst_48 = arith.constant dense<0.000000e+00> : vector<2x128xf32>
    %65 = vector.multi_reduction <add>, %33, %cst_48 [0] : vector<2x2x128xf32> to vector<2x128xf32>
    %cst_49 = arith.constant dense<0.000000e+00> : vector<128xf32>
    %66 = vector.multi_reduction <add>, %65, %cst_49 [0] : vector<2x128xf32> to vector<128xf32>
    %67 = vector.shape_cast %66 : vector<128xf32> to vector<1x128xf32>
    %c0_50 = arith.constant 0 : index
    %c0_51 = arith.constant 0 : index
    %c4 = arith.constant 4 : index
    %c0_52 = arith.constant 0 : index
    %68 = vector.load %arg4[%c0_50, %c0_51, %c4, %c0_52] : memref<1x1x9x128xf32, #tpu.memory_space<vmem>>, vector<1x1x1x128xf32>
    %69 = vector.shape_cast %68 : vector<1x1x1x128xf32> to vector<1x128xf32>
    %70 = vector.shape_cast %67 : vector<1x128xf32> to vector<1x1x1x128xf32>
    tpu.vector_store %arg4[%c0_50, %c0_51, %c4, %c0_52], %70 {strides = array<i32>} : memref<1x1x9x128xf32, #tpu.memory_space<vmem>>, vector<1x1x1x128xf32>,
    %cst_53 = arith.constant dense<0.000000e+00> : vector<2x128xf32>
    %71 = vector.multi_reduction <add>, %34, %cst_53 [0] : vector<2x2x128xf32> to vector<2x128xf32>
    %cst_54 = arith.constant dense<0.000000e+00> : vector<128xf32>
    %72 = vector.multi_reduction <add>, %71, %cst_54 [0] : vector<2x128xf32> to vector<128xf32>
    %73 = vector.shape_cast %72 : vector<128xf32> to vector<1x128xf32>
    %c0_55 = arith.constant 0 : index
    %c0_56 = arith.constant 0 : index
    %c5 = arith.constant 5 : index
    %c0_57 = arith.constant 0 : index
    %74 = vector.load %arg4[%c0_55, %c0_56, %c5, %c0_57] : memref<1x1x9x128xf32, #tpu.memory_space<vmem>>, vector<1x1x1x128xf32>
    %75 = vector.shape_cast %74 : vector<1x1x1x128xf32> to vector<1x128xf32>
    %76 = vector.shape_cast %73 : vector<1x128xf32> to vector<1x1x1x128xf32>
    tpu.vector_store %arg4[%c0_55, %c0_56, %c5, %c0_57], %76 {strides = array<i32>} : memref<1x1x9x128xf32, #tpu.memory_space<vmem>>, vector<1x1x1x128xf32>,
    %cst_58 = arith.constant dense<0.000000e+00> : vector<2x128xf32>
    %77 = vector.multi_reduction <add>, %35, %cst_58 [0] : vector<2x2x128xf32> to vector<2x128xf32>
    %cst_59 = arith.constant dense<0.000000e+00> : vector<128xf32>
    %78 = vector.multi_reduction <add>, %77, %cst_59 [0] : vector<2x128xf32> to vector<128xf32>
    %79 = vector.shape_cast %78 : vector<128xf32> to vector<1x128xf32>
    %c0_60 = arith.constant 0 : index
    %c0_61 = arith.constant 0 : index
    %c6 = arith.constant 6 : index
    %c0_62 = arith.constant 0 : index
    %80 = vector.load %arg4[%c0_60, %c0_61, %c6, %c0_62] : memref<1x1x9x128xf32, #tpu.memory_space<vmem>>, vector<1x1x1x128xf32>
    %81 = vector.shape_cast %80 : vector<1x1x1x128xf32> to vector<1x128xf32>
    %82 = vector.shape_cast %79 : vector<1x128xf32> to vector<1x1x1x128xf32>
    tpu.vector_store %arg4[%c0_60, %c0_61, %c6, %c0_62], %82 {strides = array<i32>} : memref<1x1x9x128xf32, #tpu.memory_space<vmem>>, vector<1x1x1x128xf32>,
    %cst_63 = arith.constant dense<0.000000e+00> : vector<2x128xf32>
    %83 = vector.multi_reduction <add>, %36, %cst_63 [0] : vector<2x2x128xf32> to vector<2x128xf32>
    %cst_64 = arith.constant dense<0.000000e+00> : vector<128xf32>
    %84 = vector.multi_reduction <add>, %83, %cst_64 [0] : vector<2x128xf32> to vector<128xf32>
    %85 = vector.shape_cast %84 : vector<128xf32> to vector<1x128xf32>
    %c0_65 = arith.constant 0 : index
    %c0_66 = arith.constant 0 : index
    %c7 = arith.constant 7 : index
    %c0_67 = arith.constant 0 : index
    %86 = vector.load %arg4[%c0_65, %c0_66, %c7, %c0_67] : memref<1x1x9x128xf32, #tpu.memory_space<vmem>>, vector<1x1x1x128xf32>
    %87 = vector.shape_cast %86 : vector<1x1x1x128xf32> to vector<1x128xf32>
    %88 = vector.shape_cast %85 : vector<1x128xf32> to vector<1x1x1x128xf32>
    tpu.vector_store %arg4[%c0_65, %c0_66, %c7, %c0_67], %88 {strides = array<i32>} : memref<1x1x9x128xf32, #tpu.memory_space<vmem>>, vector<1x1x1x128xf32>,
    %cst_68 = arith.constant dense<0.000000e+00> : vector<2x128xf32>
    %89 = vector.multi_reduction <add>, %37, %cst_68 [0] : vector<2x2x128xf32> to vector<2x128xf32>
    %cst_69 = arith.constant dense<0.000000e+00> : vector<128xf32>
    %90 = vector.multi_reduction <add>, %89, %cst_69 [0] : vector<2x128xf32> to vector<128xf32>
    %91 = vector.shape_cast %90 : vector<128xf32> to vector<1x128xf32>
    %c0_70 = arith.constant 0 : index
    %c0_71 = arith.constant 0 : index
    %c8 = arith.constant 8 : index
    %c0_72 = arith.constant 0 : index
    %92 = vector.load %arg4[%c0_70, %c0_71, %c8, %c0_72] : memref<1x1x9x128xf32, #tpu.memory_space<vmem>>, vector<1x1x1x128xf32>
    %93 = vector.shape_cast %92 : vector<1x1x1x128xf32> to vector<1x128xf32>
    %94 = vector.shape_cast %91 : vector<1x128xf32> to vector<1x1x1x128xf32>
    tpu.vector_store %arg4[%c0_70, %c0_71, %c8, %c0_72], %94 {strides = array<i32>} : memref<1x1x9x128xf32, #tpu.memory_space<vmem>>, vector<1x1x1x128xf32>,
    return
  }
  func.func @transform_0(%arg0: i32, %arg1: i32) -> (i32, i32, i32, i32) {
    %c0_i32 = arith.constant 0 : i32
    %c0_i32_0 = arith.constant 0 : i32
    %c0_i32_1 = arith.constant 0 : i32
    return %arg0, %c0_i32, %arg1, %c0_i32_0 : i32, i32, i32, i32
  }
  func.func @transform_1(%arg0: i32, %arg1: i32) -> (i32, i32, i32, i32) {
    %c0_i32 = arith.constant 0 : i32
    %c0_i32_0 = arith.constant 0 : i32
    %c0_i32_1 = arith.constant 0 : i32
    return %arg0, %c0_i32, %arg1, %c0_i32_0 : i32, i32, i32, i32
  }
  func.func @transform_2(%arg0: i32, %arg1: i32) -> (i32, i32, i32, i32) {
    %c0_i32 = arith.constant 0 : i32
    %c0_i32_0 = arith.constant 0 : i32
    %c0_i32_1 = arith.constant 0 : i32
    return %arg0, %arg1, %c0_i32, %c0_i32_0 : i32, i32, i32, i32
  }
}

</mosaic_0001>

<llo_original>
// kernel: tpu_custom_call.1
$region0: #{tpu_custom_call.1}
  #allocation0 [shape = 'u32[]', space=smem, size = 0x4, offset = 0x4, fixed_abs, tag = 'smem constant byte address 0x4 - core index']
  #allocation1 [shape = 'u32[144,128]{1,0:T(1,128)}', space=vmem, size = 0x12000, scoped, tag = 'internal scratch']
  %s0 = inlined_call_operand.hbm [shape: f32[2,3,2,128], index: 0, kind: input, shape index: {}]
  %s1 = inlined_call_operand.hbm [shape: f32[2,4,2,128], index: 1, kind: input, shape index: {}]
  %s2 = inlined_call_operand.vmem [shape: f32[1,1,9,128], index: 2, kind: output, shape index: {}]
  %s3 = sld [smem:[#allocation0]]
  $region26: #{tpu_custom_call.1} parent=0
    _
  %s5 = ssub.s32 1, %s3
  %s6 = scalar_select 0, %s5, %s3
  $region1: #{tpu_custom_call.1} parent=0
    #allocation2 [shape = 'u8[6144]{0}', space=vmem, size = 0x1800, scoped, tag = 'input window, operand 0, single buffered']
    #allocation3 [shape = 's32[1]{0}', space=sflag, size = 0x4, scoped, tag = 'scoped memory for tpu_custom_call.1']
    #allocation4 [shape = 'u8[8192]{0}', space=vmem, size = 0x2000, scoped, tag = 'input window, operand 1, single buffered']
    #allocation5 [shape = 's32[1]{0}', space=sflag, size = 0x4, scoped, tag = 'scoped memory for tpu_custom_call.1']
    %7 = vsyncpa [#allocation3], 0
    %8 = vsyncpa [#allocation5], 0
    // Predicated region
    $region2: #{tpu_custom_call.1} parent=1 // pred_check
      _
    $region3: #{tpu_custom_call.1} parent=1 // pred_check_branch
      %10 = sbr.rel (0) target = $region5
    $region4: #{tpu_custom_call.1} parent=1 // pred_region
      %s12 = ssub.s32 192, 192
      %13 = vsyncadd [#allocation3], %s12
      %s14 = sshll.u32 [#allocation2], 4
      %s15 = int_to_ptr.vmem [resolvable:$true] %s14
      %20 = dma.hbm_to_vmem [thread:$0]  %s0, 192, %s15, [#allocation3], 32, 32, 2
    $region5: #{tpu_custom_call.1} parent=1 // pred_fallthru
      _
    // Predicated region
    $region6: #{tpu_custom_call.1} parent=1 // pred_check
      _
    $region7: #{tpu_custom_call.1} parent=1 // pred_check_branch
      %22 = sbr.rel (0) target = $region9
    $region8: #{tpu_custom_call.1} parent=1 // pred_region
      %s24 = ssub.s32 256, 256
      %25 = vsyncadd [#allocation5], %s24
      %s26 = sshll.u32 [#allocation4], 4
      %s27 = int_to_ptr.vmem [resolvable:$true] %s26
      %32 = dma.hbm_to_vmem [thread:$0]  %s1, 256, %s27, [#allocation5], 32, 32, 2
    $region9: #{tpu_custom_call.1} parent=1 // pred_fallthru
      _
    // Predicated region
    $region10: #{tpu_custom_call.1} parent=1 // pred_check
      _
    $region11: #{tpu_custom_call.1} parent=1 // pred_check_branch
      %34 = sbr.rel (0) target = $region13
    $region12: #{tpu_custom_call.1} parent=1 // pred_region
      %35 = dma.done [#allocation3], 192
    $region13: #{tpu_custom_call.1} parent=1 // pred_fallthru
      _
    // Predicated region
    $region14: #{tpu_custom_call.1} parent=1 // pred_check
      _
    $region15: #{tpu_custom_call.1} parent=1 // pred_check_branch
      %37 = sbr.rel (0) target = $region17
    $region16: #{tpu_custom_call.1} parent=1 // pred_region
      %38 = dma.done [#allocation5], 256
    $region17: #{tpu_custom_call.1} parent=1 // pred_fallthru
      _
    %v39 = vld [vmem:[#allocation2] sm:$0x3]
    %v40 = vld [vmem:[#allocation2 + $0x6] sm:$0x3]
    %s41 = scalar_lea.vmem [#allocation2], 2
    %v42 = vld [vmem:[%s41] sm:$0x3]
    %v43 = vld [vmem:[%s41 + $0x6] sm:$0x3]
    %s44 = scalar_lea.vmem [#allocation2], 4
    %v45 = vld [vmem:[%s44] sm:$0x3]
    %v46 = vld [vmem:[%s44 + $0x6] sm:$0x3]
    %v47 = vld [vmem:[#allocation4] sm:$0x3]
    %v48 = vld [vmem:[#allocation4 + $0x8] sm:$0x3]
    %v49 = vsub.f32 1.0, %v47
    %v50 = vsub.f32 1.0, %v48
    %s51 = scalar_lea.vmem [#allocation4], 2
    %v52 = vld [vmem:[%s51] sm:$0x3]
    %v53 = vld [vmem:[%s51 + $0x8] sm:$0x3]
    %s54 = scalar_lea.vmem [#allocation4], 4
    %v55 = vld [vmem:[%s54] sm:$0x3]
    %v56 = vld [vmem:[%s54 + $0x8] sm:$0x3]
    %s57 = scalar_lea.vmem [#allocation4], 6
    %v58 = vld [vmem:[%s57] sm:$0x3]
    %v59 = vld [vmem:[%s57 + $0x8] sm:$0x3]
    %v60 = vmax.f32 %v39, %v42
    %v61 = vmax.f32 %v40, %v43
    %v62 = vmax.f32 %v60, %v45
    %v63 = vmax.f32 %v61, %v46
    %vm64 = vcmp.ne.f32.partialorder %v39, %v62
    %vm65 = vcmp.ne.f32.partialorder %v40, %v63
    %vm66 = vcmp.eq.f32.partialorder %v39, %v62
    %vm67 = vcmp.eq.f32.partialorder %v40, %v63
    %v68 = vsel %vm66, 1, 0
    %v69 = vsel %vm67, 1, 0
    %v70 = vcvt.s32.f32 %v68
    %v71 = vcvt.s32.f32 %v69
    %vm72 = vcmp.eq.f32.partialorder %v42, %v62
    %vm73 = vcmp.eq.f32.partialorder %v43, %v63
    %vm74 = vmand %vm72, %vm64
    %vm75 = vmand %vm73, %vm65
    %v76 = vsel %vm74, 1, 0
    %v77 = vsel %vm75, 1, 0
    %v78 = vcvt.s32.f32 %v76
    %v79 = vcvt.s32.f32 %v77
    %vm80 = vcmp.eq.f32.partialorder %v45, %v62
    %vm81 = vcmp.eq.f32.partialorder %v46, %v63
    %vm82 = vmand %vm80, %vm64
    %vm83 = vmand %vm81, %vm65
    %vm84 = vcmp.ne.f32.partialorder %v42, %v62
    %vm85 = vcmp.ne.f32.partialorder %v43, %v63
    %vm86 = vmand %vm82, %vm84
    %vm87 = vmand %vm83, %vm85
    %v88 = vsel %vm86, 1, 0
    %v89 = vsel %vm87, 1, 0
    %v90 = vcvt.s32.f32 %v88
    %v91 = vcvt.s32.f32 %v89
    %v92 = vmul.f32 %v70, %v49
    %v93 = vmul.f32 %v71, %v50
    %v94 = vmul.f32 %v78, %v49
    %v95 = vmul.f32 %v79, %v50
    %v96 = vmul.f32 %v90, %v49
    %v97 = vmul.f32 %v91, %v50
    %v98 = vmul.f32 %v52, %v49
    %v99 = vmul.f32 %v53, %v50
    %v100 = vmul.f32 %v55, %v49
    %v101 = vmul.f32 %v56, %v50
    %v102 = vmul.f32 %v58, %v49
    %v103 = vmul.f32 %v59, %v50
    %v104 = vmul.f32 %v92, %v52
    %v105 = vmul.f32 %v93, %v53
    %v106 = vmul.f32 %v94, %v55
    %v107 = vmul.f32 %v95, %v56
    %v108 = vmul.f32 %v96, %v58
    %v109 = vmul.f32 %v97, %v59
    %vm110 = vcmask 1041408
    %v111 = vsel %vm110, %v104, 0.0
    %v112 = vsel %vm110, %v105, 0.0
    %v113 = vadd.f32 %v111, %v112
    %v114 = vsel %vm110, %v113, 0.0
    %v115 = vrot.slane %v114, 4
    %v116 = vadd.f32 %v114, %v115
    %v117 = vrot.slane %v116, 2
    %v118 = vadd.f32 %v116, %v117
    %v119 = vrot.slane %v118, 1
    %v120 = vadd.f32 %v118, %v119
    %121 = vst [vmem:[%s2] sm:$0x1] %v120
    %v122 = vsel %vm110, %v106, 0.0
    %v123 = vsel %vm110, %v107, 0.0
    %v124 = vadd.f32 %v122, %v123
    %v125 = vsel %vm110, %v124, 0.0
    %v126 = vrot.slane %v125, 4
    %v127 = vadd.f32 %v125, %v126
    %v128 = vrot.slane %v127, 2
    %v129 = vadd.f32 %v127, %v128
    %v130 = vrot.slane %v129, 1
    %v131 = vadd.f32 %v129, %v130
    %132 = vst [vmem:[%s2 + $0x1] sm:$0x1] %v131
    %v133 = vsel %vm110, %v108, 0.0
    %v134 = vsel %vm110, %v109, 0.0
    %v135 = vadd.f32 %v133, %v134
    %v136 = vsel %vm110, %v135, 0.0
    %v137 = vrot.slane %v136, 4
    %v138 = vadd.f32 %v136, %v137
    %v139 = vrot.slane %v138, 2
    %v140 = vadd.f32 %v138, %v139
    %v141 = vrot.slane %v140, 1
    %v142 = vadd.f32 %v140, %v141
    %143 = vst [vmem:[%s2 + $0x2] sm:$0x1] %v142
    %v144 = vsel %vm110, %v92, 0.0
    %v145 = vsel %vm110, %v93, 0.0
    %v146 = vadd.f32 %v144, %v145
    %v147 = vsel %vm110, %v146, 0.0
    %v148 = vrot.slane %v147, 4
    %v149 = vadd.f32 %v147, %v148
    %v150 = vrot.slane %v149, 2
    %v151 = vadd.f32 %v149, %v150
    %v152 = vrot.slane %v151, 1
    %v153 = vadd.f32 %v151, %v152
    %154 = vst [vmem:[%s2 + $0x3] sm:$0x1] %v153
    %v155 = vsel %vm110, %v94, 0.0
    %v156 = vsel %vm110, %v95, 0.0
    %v157 = vadd.f32 %v155, %v156
    %v158 = vsel %vm110, %v157, 0.0
    %v159 = vrot.slane %v158, 4
    %v160 = vadd.f32 %v158, %v159
    %v161 = vrot.slane %v160, 2
    %v162 = vadd.f32 %v160, %v161
    %v163 = vrot.slane %v162, 1
    %v164 = vadd.f32 %v162, %v163
    %165 = vst [vmem:[%s2 + $0x4] sm:$0x1] %v164
    %v166 = vsel %vm110, %v96, 0.0
    %v167 = vsel %vm110, %v97, 0.0
    %v168 = vadd.f32 %v166, %v167
    %v169 = vsel %vm110, %v168, 0.0
    %v170 = vrot.slane %v169, 4
    %v171 = vadd.f32 %v169, %v170
    %v172 = vrot.slane %v171, 2
    %v173 = vadd.f32 %v171, %v172
    %v174 = vrot.slane %v173, 1
    %v175 = vadd.f32 %v173, %v174
    %176 = vst [vmem:[%s2 + $0x5] sm:$0x1] %v175
    %v177 = vsel %vm110, %v98, 0.0
    %v178 = vsel %vm110, %v99, 0.0
    %v179 = vadd.f32 %v177, %v178
    %v180 = vsel %vm110, %v179, 0.0
    %v181 = vrot.slane %v180, 4
    %v182 = vadd.f32 %v180, %v181
    %v183 = vrot.slane %v182, 2
    %v184 = vadd.f32 %v182, %v183
    %v185 = vrot.slane %v184, 1
    %v186 = vadd.f32 %v184, %v185
    %187 = vst [vmem:[%s2 + $0x6] sm:$0x1] %v186
    %v188 = vsel %vm110, %v100, 0.0
    %v189 = vsel %vm110, %v101, 0.0
    %v190 = vadd.f32 %v188, %v189
    %v191 = vsel %vm110, %v190, 0.0
    %v192 = vrot.slane %v191, 4
    %v193 = vadd.f32 %v191, %v192
    %v194 = vrot.slane %v193, 2
    %v195 = vadd.f32 %v193, %v194
    %v196 = vrot.slane %v195, 1
    %v197 = vadd.f32 %v195, %v196
    %198 = vst [vmem:[%s2 + $0x7] sm:$0x1] %v197
    %v199 = vsel %vm110, %v102, 0.0
    %v200 = vsel %vm110, %v103, 0.0
    %v201 = vadd.f32 %v199, %v200
    %v202 = vsel %vm110, %v201, 0.0
    %v203 = vrot.slane %v202, 4
    %v204 = vadd.f32 %v202, %v203
    %v205 = vrot.slane %v204, 2
    %v206 = vadd.f32 %v204, %v205
    %v207 = vrot.slane %v206, 1
    %v208 = vadd.f32 %v206, %v207
    %209 = vst [vmem:[%s2 + $0x8] sm:$0x1] %v208
    // Predicated region
    $region18: #{tpu_custom_call.1} parent=1 // pred_check
      _
    $region19: #{tpu_custom_call.1} parent=1 // pred_check_branch
      %211 = sbr.rel (0) target = $region21
    $region20: #{tpu_custom_call.1} parent=1 // pred_region
      _
    $region21: #{tpu_custom_call.1} parent=1 // pred_fallthru
      _
    // Predicated region
    $region22: #{tpu_custom_call.1} parent=1 // pred_check
      _
    $region23: #{tpu_custom_call.1} parent=1 // pred_check_branch
      %213 = sbr.rel (0) target = $region25
    $region24: #{tpu_custom_call.1} parent=1 // pred_region
      _
    $region25: #{tpu_custom_call.1} parent=1 // pred_fallthru
      _
    %214 = vsyncpa [#allocation3], 1
    %215 = vsyncpa [#allocation5], 1

</llo_original>
